<compile_context>
chip_gen: v6e
topology: v6e:2x2x1
jax: 0.10.0
libtpu: 0.0.40
codegen_flags: <defaults>
</compile_context>

<pallas_src>
import jax
import jax.numpy as jnp
from jax.experimental import pallas as pl
from jax.experimental.pallas import tpu as pltpu


def _fused_conv1x1_kernel(x_ref, w_ref, b_ref, o_ref):
    # x_ref: (8, cols)       flattened image packed into full (8,128) vregs
    # w_ref: (cout*8, 1)     merged weight (w1+w2), each channel repeated 8x (row r -> channel r//8)
    # b_ref: (cout*8, 1)     merged bias (b1+b2), same layout
    # o_ref: (cout*8, cols)  rows [8c, 8c+8) hold output channel c over the slab
    x = x_ref[...]
    reps = o_ref.shape[0] // x.shape[0]
    xt = jnp.concatenate([x] * reps, axis=0)            # sublane-aligned vreg copies only
    v2 = w_ref[...] * xt + b_ref[...]                    # VPU broadcast FMA (no MXU)
    # v6 = v1 + (v2 + relu(v2)) + t1 == 2*v2 + relu(v2)
    o_ref[...] = (2.0 * v2 + jnp.maximum(v2, 0.0)).astype(o_ref.dtype)


def _forward_impl(x_nchw, w1, b1, w2, b2):
    n, cin, h, w = x_nchw.shape
    assert n == 1 and cin == 1
    cout = w1.shape[0]

    SUB, LANE = 8, 128
    hw = h * w
    cols = ((hw + SUB * LANE - 1) // (SUB * LANE)) * LANE   # lane-dense column count
    hw_pad = SUB * cols

    # Pack the (unpadded) image into a dense (8, cols) slab.
    x_flat = x_nchw.reshape(hw).astype(jnp.float32)
    x_flat = jnp.pad(x_flat, (0, hw_pad - hw))
    x_slab = x_flat.reshape(SUB, cols)

    # Merge the two 1x1 convs: the result depends only on v2 = (w1+w2)*x + (b1+b2).
    w12 = (w1 + w2).reshape(cout).astype(jnp.float32)
    b12 = (b1 + b2).reshape(cout).astype(jnp.float32)
    w_rows = jnp.repeat(w12, SUB).reshape(cout * SUB, 1)
    b_rows = jnp.repeat(b12, SUB).reshape(cout * SUB, 1)

    out_slab = pl.pallas_call(
        _fused_conv1x1_kernel,
        out_shape=jax.ShapeDtypeStruct((cout * SUB, cols), jnp.float32),
        grid_spec=pltpu.PrefetchScalarGridSpec(
            num_scalar_prefetch=0,
            grid=(1,),                                     # single block: whole problem fits VMEM
            in_specs=[
                pl.BlockSpec((SUB, cols), lambda i: (0, 0)),
                pl.BlockSpec((cout * SUB, 1), lambda i: (0, 0)),
                pl.BlockSpec((cout * SUB, 1), lambda i: (0, 0)),
            ],
            out_specs=pl.BlockSpec((cout * SUB, cols), lambda i: (0, 0)),
        ),
        compiler_params=pltpu.CompilerParams(
            dimension_semantics=("arbitrary",)),
    )(x_slab, w_rows, b_rows)

    # Unpack interior: (cout*8, cols) -> (cout, h, w)
    interior = out_slab.reshape(cout, hw_pad)[:, :hw].reshape(cout, h, w)

    # padding=1 border: padded input is zero there, so v2 = b12 and v6 = 2*b12 + relu(b12).
    border = (2.0 * b12 + jnp.maximum(b12, 0.0)).reshape(cout, 1, 1)
    full = jnp.broadcast_to(border, (cout, h + 2, w + 2))
    full = full.at[:, 1:h + 1, 1:w + 1].set(interior)
    return full.reshape(1, cout, h + 2, w + 2)


fused_model_forward = jax.jit(_forward_impl)


def reference_forward(x_nchw, w1, b1, w2, b2):
    """Pure-JAX reference mirroring the PyTorch module."""
    xp = jnp.pad(x_nchw, ((0, 0), (0, 0), (1, 1), (1, 1)))

    def conv1x1(x, wt, bs):
        y = jnp.einsum('nchw,oc->nohw', x, wt.reshape(wt.shape[0], wt.shape[1]))
        return y + bs.reshape(1, -1, 1, 1)

    t1 = conv1x1(xp, w1, b1)
    v1 = conv1x1(xp, w2, b2)
    v2 = t1 + v1
    v3 = jnp.maximum(v2, 0.0)
    v4 = v2 + v3
    v5 = v1 + v4
    v6 = v5 + t1
    return v6


if __name__ == "__main__":
    key = jax.random.PRNGKey(0)
    k_x, k_w1, k_b1, k_w2, k_b2 = jax.random.split(key, 5)

    # Input consistent with the module: (1, 1, 64, 64)
    x1 = jax.random.normal(k_x, (1, 1, 64, 64), dtype=jnp.float32)

    # Conv2d(1, 8, kernel_size=1) parameter shapes, deterministic init.
    cin, cout = 1, 8
    bound = 1.0 / (cin * 1 * 1) ** 0.5
    w1 = jax.random.uniform(k_w1, (cout, cin, 1, 1), jnp.float32, -bound, bound)
    b1 = jax.random.uniform(k_b1, (cout,), jnp.float32, -bound, bound)
    w2 = jax.random.uniform(k_w2, (cout, cin, 1, 1), jnp.float32, -bound, bound)
    b2 = jax.random.uniform(k_b2, (cout,), jnp.float32, -bound, bound)

    out = fused_model_forward(x1, w1, b1, w2, b2)
    out = jax.block_until_ready(out)

    ref = reference_forward(x1, w1, b1, w2, b2)
    assert out.shape == (1, 8, 66, 66), out.shape
    assert jnp.allclose(out, ref, atol=1e-5, rtol=1e-5), "mismatch vs reference"

    print("KERNEL_OK")
</pallas_src>

<mosaic_0001>
module attributes {stable_mosaic.version = 11 : i64} {
  func.func @_fused_conv1x1_kernel(%arg0: i32, %arg1: memref<8x512xf32, #tpu.memory_space<vmem>>, %arg2: memref<64x1xf32, #tpu.memory_space<vmem>>, %arg3: memref<64x1xf32, #tpu.memory_space<vmem>>, %arg4: memref<64x512xf32, #tpu.memory_space<vmem>>) attributes {dimension_semantics = [#tpu.dimension_semantics<arbitrary>], iteration_bounds = array<i64: 1>, scalar_prefetch = 0 : i64, scratch_operands = 0 : i64, tpu.core_type = #tpu.core_type<tc>, window_params = [{pipeline_mode = #tpu.pipeline_mode<synchronous>, transform_indices = @transform_0, window_bounds = array<i64: 8, 512>}, {pipeline_mode = #tpu.pipeline_mode<synchronous>, transform_indices = @transform_1, window_bounds = array<i64: 64, 1>}, {pipeline_mode = #tpu.pipeline_mode<synchronous>, transform_indices = @transform_2, window_bounds = array<i64: 64, 1>}, {pipeline_mode = #tpu.pipeline_mode<synchronous>, transform_indices = @transform_3, window_bounds = array<i64: 64, 512>}]} {
    %c0 = arith.constant 0 : index
    %c0_0 = arith.constant 0 : index
    %0 = vector.load %arg1[%c0, %c0_0] : memref<8x512xf32, #tpu.memory_space<vmem>>, vector<8x512xf32>
    %1 = tpu.concatenate %0, %0, %0, %0, %0, %0, %0, %0 in 0 : vector<8x512xf32>, vector<8x512xf32>, vector<8x512xf32>, vector<8x512xf32>, vector<8x512xf32>, vector<8x512xf32>, vector<8x512xf32>, vector<8x512xf32> -> vector<64x512xf32>
    %c0_1 = arith.constant 0 : index
    %c0_2 = arith.constant 0 : index
    %2 = vector.load %arg2[%c0_1, %c0_2] : memref<64x1xf32, #tpu.memory_space<vmem>>, vector<64x1xf32>
    %3 = vector.broadcast %2 : vector<64x1xf32> to vector<64x512xf32>
    %4 = arith.mulf %3, %1 : vector<64x512xf32>
    %c0_3 = arith.constant 0 : index
    %c0_4 = arith.constant 0 : index
    %5 = vector.load %arg3[%c0_3, %c0_4] : memref<64x1xf32, #tpu.memory_space<vmem>>, vector<64x1xf32>
    %6 = vector.broadcast %5 : vector<64x1xf32> to vector<64x512xf32>
    %7 = arith.addf %4, %6 : vector<64x512xf32>
    %cst = arith.constant 2.000000e+00 : f32
    %8 = vector.broadcast %cst : f32 to vector<64x512xf32>
    %9 = arith.mulf %8, %7 : vector<64x512xf32>
    %cst_5 = arith.constant 0.000000e+00 : f32
    %10 = vector.broadcast %cst_5 : f32 to vector<64x512xf32>
    %11 = arith.maximumf %7, %10 : vector<64x512xf32>
    %12 = arith.addf %9, %11 : vector<64x512xf32>
    %c0_6 = arith.constant 0 : index
    %c0_7 = arith.constant 0 : index
    %13 = vector.load %arg4[%c0_6, %c0_7] : memref<64x512xf32, #tpu.memory_space<vmem>>, vector<64x512xf32>
    tpu.vector_store %arg4[%c0_6, %c0_7], %12 {strides = array<i32>} : memref<64x512xf32, #tpu.memory_space<vmem>>, vector<64x512xf32>,
    return
  }
  func.func @transform_0(%arg0: i32) -> (i32, i32) {
    %c0_i32 = arith.constant 0 : i32
    %c0_i32_0 = arith.constant 0 : i32
    %c0_i32_1 = arith.constant 0 : i32
    return %c0_i32, %c0_i32_0 : i32, i32
  }
  func.func @transform_1(%arg0: i32) -> (i32, i32) {
    %c0_i32 = arith.constant 0 : i32
    %c0_i32_0 = arith.constant 0 : i32
    %c0_i32_1 = arith.constant 0 : i32
    return %c0_i32, %c0_i32_0 : i32, i32
  }
  func.func @transform_2(%arg0: i32) -> (i32, i32) {
    %c0_i32 = arith.constant 0 : i32
    %c0_i32_0 = arith.constant 0 : i32
    %c0_i32_1 = arith.constant 0 : i32
    return %c0_i32, %c0_i32_0 : i32, i32
  }
  func.func @transform_3(%arg0: i32) -> (i32, i32) {
    %c0_i32 = arith.constant 0 : i32
    %c0_i32_0 = arith.constant 0 : i32
    %c0_i32_1 = arith.constant 0 : i32
    return %c0_i32, %c0_i32_0 : i32, i32
  }
}

</mosaic_0001>

<llo_original>
// kernel: _forward_impl.1
$region0: #{_forward_impl.1}
  #allocation0 [shape = 'u32[]', space=smem, size = 0x4, offset = 0x4, fixed_abs, tag = 'smem constant byte address 0x4 - core index']
  #allocation1 [shape = 'u32[144,128]{1,0:T(1,128)}', space=vmem, size = 0x12000, scoped, tag = 'internal scratch']
  %s0 = inlined_call_operand.vmem [shape: f32[8,512], index: 0, kind: input, shape index: {}]
  %s1 = inlined_call_operand.vmem [shape: f32[64,1], index: 1, kind: input, shape index: {}]
  %s2 = inlined_call_operand.vmem [shape: f32[64,1], index: 2, kind: input, shape index: {}]
  %s3 = inlined_call_operand.vmem [shape: f32[64,512], index: 3, kind: output, shape index: {}]
  %s4 = sld [smem:[#allocation0]]
  $region22: #{_forward_impl.1} parent=0
    _
  %s6 = ssub.s32 1, %s4
  %s7 = scalar_select 0, %s6, %s4
  // Predicated region
  $region2: #{_forward_impl.1} parent=0 // pred_check
    _
  $region3: #{_forward_impl.1} parent=0 // pred_check_branch
    %9 = sbr.rel (0) target = $region5
  $region4: #{_forward_impl.1} parent=0 // pred_region
    _
  $region5: #{_forward_impl.1} parent=0 // pred_fallthru
    _
  // Predicated region
  $region6: #{_forward_impl.1} parent=0 // pred_check
    _
  $region7: #{_forward_impl.1} parent=0 // pred_check_branch
    %11 = sbr.rel (0) target = $region9
  $region8: #{_forward_impl.1} parent=0 // pred_region
    _
  $region9: #{_forward_impl.1} parent=0 // pred_fallthru
    _
  // Predicated region
  $region10: #{_forward_impl.1} parent=0 // pred_check
    _
  $region11: #{_forward_impl.1} parent=0 // pred_check_branch
    %13 = sbr.rel (0) target = $region13
  $region12: #{_forward_impl.1} parent=0 // pred_region
    _
  $region13: #{_forward_impl.1} parent=0 // pred_fallthru
    _
  %v14 = vld [vmem:[%s0] sm:$0xff]
  %v15 = vld [vmem:[%s0 + $0x8] sm:$0xff]
  %v16 = vld [vmem:[%s0 + $0x10] sm:$0xff]
  %v17 = vld [vmem:[%s0 + $0x18] sm:$0xff]
  %v18 = vld [vmem:[%s1] sm:$0xff]
  %v19 = vld [vmem:[%s1 + $0x8] sm:$0xff]
  %v20 = vld [vmem:[%s1 + $0x10] sm:$0xff]
  %v21 = vld [vmem:[%s1 + $0x18] sm:$0xff]
  %v22 = vld [vmem:[%s1 + $0x20] sm:$0xff]
  %v23 = vld [vmem:[%s1 + $0x28] sm:$0xff]
  %v24 = vld [vmem:[%s1 + $0x30] sm:$0xff]
  %v25 = vld [vmem:[%s1 + $0x38] sm:$0xff]
  %27 = vset.pattern.permute.xlu0 0
  %28 = vperm.xlu0 %27, %v18
  %v29 = vpop.permute.xlu0 %28
  %32 = vset.pattern.permute.xlu0 0
  %33 = vperm.xlu0 %32, %v19
  %v34 = vpop.permute.xlu0 %33
  %37 = vset.pattern.permute.xlu0 0
  %38 = vperm.xlu0 %37, %v20
  %v39 = vpop.permute.xlu0 %38
  %42 = vset.pattern.permute.xlu0 0
  %43 = vperm.xlu0 %42, %v21
  %v44 = vpop.permute.xlu0 %43
  %47 = vset.pattern.permute.xlu0 0
  %48 = vperm.xlu0 %47, %v22
  %v49 = vpop.permute.xlu0 %48
  %52 = vset.pattern.permute.xlu0 0
  %53 = vperm.xlu0 %52, %v23
  %v54 = vpop.permute.xlu0 %53
  %57 = vset.pattern.permute.xlu0 0
  %58 = vperm.xlu0 %57, %v24
  %v59 = vpop.permute.xlu0 %58
  %62 = vset.pattern.permute.xlu0 0
  %63 = vperm.xlu0 %62, %v25
  %v64 = vpop.permute.xlu0 %63
  %v66 = vmul.f32 %v29, %v14
  %v67 = vmul.f32 %v29, %v15
  %v68 = vmul.f32 %v29, %v16
  %v69 = vmul.f32 %v29, %v17
  %v70 = vmul.f32 %v34, %v14
  %v71 = vmul.f32 %v34, %v15
  %v72 = vmul.f32 %v34, %v16
  %v73 = vmul.f32 %v34, %v17
  %v74 = vmul.f32 %v39, %v14
  %v75 = vmul.f32 %v39, %v15
  %v76 = vmul.f32 %v39, %v16
  %v77 = vmul.f32 %v39, %v17
  %v78 = vmul.f32 %v44, %v14
  %v79 = vmul.f32 %v44, %v15
  %v80 = vmul.f32 %v44, %v16
  %v81 = vmul.f32 %v44, %v17
  %v82 = vmul.f32 %v49, %v14
  %v83 = vmul.f32 %v49, %v15
  %v84 = vmul.f32 %v49, %v16
  %v85 = vmul.f32 %v49, %v17
  %v86 = vmul.f32 %v54, %v14
  %v87 = vmul.f32 %v54, %v15
  %v88 = vmul.f32 %v54, %v16
  %v89 = vmul.f32 %v54, %v17
  %v90 = vmul.f32 %v59, %v14
  %v91 = vmul.f32 %v59, %v15
  %v92 = vmul.f32 %v59, %v16
  %v93 = vmul.f32 %v59, %v17
  %v94 = vmul.f32 %v64, %v14
  %v95 = vmul.f32 %v64, %v15
  %v96 = vmul.f32 %v64, %v16
  %v97 = vmul.f32 %v64, %v17
  %v98 = vld [vmem:[%s2] sm:$0xff]
  %v99 = vld [vmem:[%s2 + $0x8] sm:$0xff]
  %v100 = vld [vmem:[%s2 + $0x10] sm:$0xff]
  %v101 = vld [vmem:[%s2 + $0x18] sm:$0xff]
  %v102 = vld [vmem:[%s2 + $0x20] sm:$0xff]
  %v103 = vld [vmem:[%s2 + $0x28] sm:$0xff]
  %v104 = vld [vmem:[%s2 + $0x30] sm:$0xff]
  %v105 = vld [vmem:[%s2 + $0x38] sm:$0xff]
  %107 = vset.pattern.permute.xlu0 0
  %108 = vperm.xlu0 %107, %v98
  %v109 = vpop.permute.xlu0 %108
  %112 = vset.pattern.permute.xlu0 0
  %113 = vperm.xlu0 %112, %v99
  %v114 = vpop.permute.xlu0 %113
  %117 = vset.pattern.permute.xlu0 0
  %118 = vperm.xlu0 %117, %v100
  %v119 = vpop.permute.xlu0 %118
  %122 = vset.pattern.permute.xlu0 0
  %123 = vperm.xlu0 %122, %v101
  %v124 = vpop.permute.xlu0 %123
  %127 = vset.pattern.permute.xlu0 0
  %128 = vperm.xlu0 %127, %v102
  %v129 = vpop.permute.xlu0 %128
  %132 = vset.pattern.permute.xlu0 0
  %133 = vperm.xlu0 %132, %v103
  %v134 = vpop.permute.xlu0 %133
  %137 = vset.pattern.permute.xlu0 0
  %138 = vperm.xlu0 %137, %v104
  %v139 = vpop.permute.xlu0 %138
  %142 = vset.pattern.permute.xlu0 0
  %143 = vperm.xlu0 %142, %v105
  %v144 = vpop.permute.xlu0 %143
  %v146 = vadd.f32 %v66, %v109
  %v147 = vadd.f32 %v67, %v109
  %v148 = vadd.f32 %v68, %v109
  %v149 = vadd.f32 %v69, %v109
  %v150 = vadd.f32 %v70, %v114
  %v151 = vadd.f32 %v71, %v114
  %v152 = vadd.f32 %v72, %v114
  %v153 = vadd.f32 %v73, %v114
  %v154 = vadd.f32 %v74, %v119
  %v155 = vadd.f32 %v75, %v119
  %v156 = vadd.f32 %v76, %v119
  %v157 = vadd.f32 %v77, %v119
  %v158 = vadd.f32 %v78, %v124
  %v159 = vadd.f32 %v79, %v124
  %v160 = vadd.f32 %v80, %v124
  %v161 = vadd.f32 %v81, %v124
  %v162 = vadd.f32 %v82, %v129
  %v163 = vadd.f32 %v83, %v129
  %v164 = vadd.f32 %v84, %v129
  %v165 = vadd.f32 %v85, %v129
  %v166 = vadd.f32 %v86, %v134
  %v167 = vadd.f32 %v87, %v134
  %v168 = vadd.f32 %v88, %v134
  %v169 = vadd.f32 %v89, %v134
  %v170 = vadd.f32 %v90, %v139
  %v171 = vadd.f32 %v91, %v139
  %v172 = vadd.f32 %v92, %v139
  %v173 = vadd.f32 %v93, %v139
  %v174 = vadd.f32 %v94, %v144
  %v175 = vadd.f32 %v95, %v144
  %v176 = vadd.f32 %v96, %v144
  %v177 = vadd.f32 %v97, %v144
  %v178 = vmul.f32 %v146, 2.0
  %v179 = vmul.f32 %v147, 2.0
  %v180 = vmul.f32 %v148, 2.0
  %v181 = vmul.f32 %v149, 2.0
  %v182 = vmul.f32 %v150, 2.0
  %v183 = vmul.f32 %v151, 2.0
  %v184 = vmul.f32 %v152, 2.0
  %v185 = vmul.f32 %v153, 2.0
  %v186 = vmul.f32 %v154, 2.0
  %v187 = vmul.f32 %v155, 2.0
  %v188 = vmul.f32 %v156, 2.0
  %v189 = vmul.f32 %v157, 2.0
  %v190 = vmul.f32 %v158, 2.0
  %v191 = vmul.f32 %v159, 2.0
  %v192 = vmul.f32 %v160, 2.0
  %v193 = vmul.f32 %v161, 2.0
  %v194 = vmul.f32 %v162, 2.0
  %v195 = vmul.f32 %v163, 2.0
  %v196 = vmul.f32 %v164, 2.0
  %v197 = vmul.f32 %v165, 2.0
  %v198 = vmul.f32 %v166, 2.0
  %v199 = vmul.f32 %v167, 2.0
  %v200 = vmul.f32 %v168, 2.0
  %v201 = vmul.f32 %v169, 2.0
  %v202 = vmul.f32 %v170, 2.0
  %v203 = vmul.f32 %v171, 2.0
  %v204 = vmul.f32 %v172, 2.0
  %v205 = vmul.f32 %v173, 2.0
  %v206 = vmul.f32 %v174, 2.0
  %v207 = vmul.f32 %v175, 2.0
  %v208 = vmul.f32 %v176, 2.0
  %v209 = vmul.f32 %v177, 2.0
  %v210 = vmax.f32 %v146, 0.0
  %v211 = vmax.f32 %v147, 0.0
  %v212 = vmax.f32 %v148, 0.0
  %v213 = vmax.f32 %v149, 0.0
  %v214 = vmax.f32 %v150, 0.0
  %v215 = vmax.f32 %v151, 0.0
  %v216 = vmax.f32 %v152, 0.0
  %v217 = vmax.f32 %v153, 0.0
  %v218 = vmax.f32 %v154, 0.0
  %v219 = vmax.f32 %v155, 0.0
  %v220 = vmax.f32 %v156, 0.0
  %v221 = vmax.f32 %v157, 0.0
  %v222 = vmax.f32 %v158, 0.0
  %v223 = vmax.f32 %v159, 0.0
  %v224 = vmax.f32 %v160, 0.0
  %v225 = vmax.f32 %v161, 0.0
  %v226 = vmax.f32 %v162, 0.0
  %v227 = vmax.f32 %v163, 0.0
  %v228 = vmax.f32 %v164, 0.0
  %v229 = vmax.f32 %v165, 0.0
  %v230 = vmax.f32 %v166, 0.0
  %v231 = vmax.f32 %v167, 0.0
  %v232 = vmax.f32 %v168, 0.0
  %v233 = vmax.f32 %v169, 0.0
  %v234 = vmax.f32 %v170, 0.0
  %v235 = vmax.f32 %v171, 0.0
  %v236 = vmax.f32 %v172, 0.0
  %v237 = vmax.f32 %v173, 0.0
  %v238 = vmax.f32 %v174, 0.0
  %v239 = vmax.f32 %v175, 0.0
  %v240 = vmax.f32 %v176, 0.0
  %v241 = vmax.f32 %v177, 0.0
  %v242 = vadd.f32 %v178, %v210
  %v243 = vadd.f32 %v179, %v211
  %v244 = vadd.f32 %v180, %v212
  %v245 = vadd.f32 %v181, %v213
  %v246 = vadd.f32 %v182, %v214
  %v247 = vadd.f32 %v183, %v215
  %v248 = vadd.f32 %v184, %v216
  %v249 = vadd.f32 %v185, %v217
  %v250 = vadd.f32 %v186, %v218
  %v251 = vadd.f32 %v187, %v219
  %v252 = vadd.f32 %v188, %v220
  %v253 = vadd.f32 %v189, %v221
  %v254 = vadd.f32 %v190, %v222
  %v255 = vadd.f32 %v191, %v223
  %v256 = vadd.f32 %v192, %v224
  %v257 = vadd.f32 %v193, %v225
  %v258 = vadd.f32 %v194, %v226
  %v259 = vadd.f32 %v195, %v227
  %v260 = vadd.f32 %v196, %v228
  %v261 = vadd.f32 %v197, %v229
  %v262 = vadd.f32 %v198, %v230
  %v263 = vadd.f32 %v199, %v231
  %v264 = vadd.f32 %v200, %v232
  %v265 = vadd.f32 %v201, %v233
  %v266 = vadd.f32 %v202, %v234
  %v267 = vadd.f32 %v203, %v235
  %v268 = vadd.f32 %v204, %v236
  %v269 = vadd.f32 %v205, %v237
  %v270 = vadd.f32 %v206, %v238
  %v271 = vadd.f32 %v207, %v239
  %v272 = vadd.f32 %v208, %v240
  %v273 = vadd.f32 %v209, %v241
  %274 = vst [vmem:[%s3] sm:$0xff] %v242
  %275 = vst [vmem:[%s3 + $0x8] sm:$0xff] %v243
  %276 = vst [vmem:[%s3 + $0x10] sm:$0xff] %v244
  %277 = vst [vmem:[%s3 + $0x18] sm:$0xff] %v245
  %278 = vst [vmem:[%s3 + $0x20] sm:$0xff] %v246
  %279 = vst [vmem:[%s3 + $0x28] sm:$0xff] %v247
  %280 = vst [vmem:[%s3 + $0x30] sm:$0xff] %v248
  %281 = vst [vmem:[%s3 + $0x38] sm:$0xff] %v249
  %282 = vst [vmem:[%s3 + $0x40] sm:$0xff] %v250
  %283 = vst [vmem:[%s3 + $0x48] sm:$0xff] %v251
  %284 = vst [vmem:[%s3 + $0x50] sm:$0xff] %v252
  %285 = vst [vmem:[%s3 + $0x58] sm:$0xff] %v253
  %286 = vst [vmem:[%s3 + $0x60] sm:$0xff] %v254
  %287 = vst [vmem:[%s3 + $0x68] sm:$0xff] %v255
  %288 = vst [vmem:[%s3 + $0x70] sm:$0xff] %v256
  %289 = vst [vmem:[%s3 + $0x78] sm:$0xff] %v257
  %290 = vst [vmem:[%s3 + $0x80] sm:$0xff] %v258
  %291 = vst [vmem:[%s3 + $0x88] sm:$0xff] %v259
  %292 = vst [vmem:[%s3 + $0x90] sm:$0xff] %v260
  %293 = vst [vmem:[%s3 + $0x98] sm:$0xff] %v261
  %294 = vst [vmem:[%s3 + $0xa0] sm:$0xff] %v262
  %295 = vst [vmem:[%s3 + $0xa8] sm:$0xff] %v263
  %296 = vst [vmem:[%s3 + $0xb0] sm:$0xff] %v264
  %297 = vst [vmem:[%s3 + $0xb8] sm:$0xff] %v265
  %298 = vst [vmem:[%s3 + $0xc0] sm:$0xff] %v266
  %299 = vst [vmem:[%s3 + $0xc8] sm:$0xff] %v267
  %300 = vst [vmem:[%s3 + $0xd0] sm:$0xff] %v268
  %301 = vst [vmem:[%s3 + $0xd8] sm:$0xff] %v269
  %302 = vst [vmem:[%s3 + $0xe0] sm:$0xff] %v270
  %303 = vst [vmem:[%s3 + $0xe8] sm:$0xff] %v271
  %304 = vst [vmem:[%s3 + $0xf0] sm:$0xff] %v272
  %305 = vst [vmem:[%s3 + $0xf8] sm:$0xff] %v273
  // Predicated region
  $region14: #{_forward_impl.1} parent=0 // pred_check
    _
  $region15: #{_forward_impl.1} parent=0 // pred_check_branch
    %307 = sbr.rel (0) target = $region17
  $region16: #{_forward_impl.1} parent=0 // pred_region
    _
  $region17: #{_forward_impl.1} parent=0 // pred_fallthru
    _
  // Predicated region
  $region18: #{_forward_impl.1} parent=0 // pred_check
    _
  $region19: #{_forward_impl.1} parent=0 // pred_check_branch
    %309 = sbr.rel (0) target = $region21
  $region20: #{_forward_impl.1} parent=0 // pred_region
    _
  $region21: #{_forward_impl.1} parent=0 // pred_fallthru
    _

</llo_original>
